<compile_context>
chip_gen: v7x
topology: tpu7x:2x2x1
jax: 0.10.0
libtpu: 0.0.40
codegen_flags: <defaults>
</compile_context>

<pallas_src>
import functools

import jax
import jax.numpy as jnp
from jax import lax
from jax.experimental import pallas as pl
from jax.experimental.pallas import tpu as pltpu

ALPHA = 0.5
GAMMA = 2.0


def _round_up(x, m):
    return ((x + m - 1) // m) * m


def _focal_loss_kernel(logits_ref, tgt_ref, out_ref, *, n_rows, row_tile, alpha, gamma):
    i = pl.program_id(0)

    x = logits_ref[...].astype(jnp.float32)            # (TN, C)
    t = tgt_ref[...]                                    # (TN, 1) int32

    # Numerically stable softmax pieces (single EUP-heavy exp over (TN, C)).
    m = jnp.max(x, axis=-1, keepdims=True)              # (TN, 1)
    z = x - m                                            # (TN, C)
    s = jnp.sum(jnp.exp(z), axis=-1, keepdims=True)      # (TN, 1)

    # Gather the shifted target logit z_t without materializing log-softmax or
    # a float one-hot: boolean select + ONE cross-lane reduction.
    col = lax.broadcasted_iota(jnp.int32, x.shape, 1)    # (TN, C)
    z_t = jnp.sum(jnp.where(col == t, z, 0.0), axis=-1, keepdims=True)  # (TN, 1)

    # Cross entropy, pt, focal weight — all on the tiny (TN, 1) column.
    ce = jnp.log(s) - z_t                                # (TN, 1)
    pt = jnp.exp(-ce)                                    # (TN, 1)
    one_minus_pt = 1.0 - pt
    if gamma == 2.0:
        w = one_minus_pt * one_minus_pt                  # square: no pow, NaN-safe
    else:
        w = jnp.maximum(one_minus_pt, 0.0) ** gamma
    loss = alpha * w * ce                                # (TN, 1)

    # Mask tail rows of the (possibly partial) last tile so out-of-bounds
    # garbage (inf/NaN) can never leak into the reduction.
    row = i * row_tile + lax.broadcasted_iota(jnp.int32, loss.shape, 0)
    loss = jnp.where(row < n_rows, loss, 0.0)

    # Per-tile partial sum (cross-sublane reduce) -> single scalar block.
    out_ref[...] = jnp.sum(loss, axis=0, keepdims=True).reshape(1, 1, 1)


def _vmem_limit_bytes():
    """Generation-aware VMEM limit with headroom for Mosaic scratch."""
    try:
        cap = pltpu.get_tpu_info().vmem_capacity_bytes
    except Exception:
        cap = 128 * 1024 * 1024
    if cap <= 64 * 1024 * 1024:          # v7x-class: 64 MiB per TensorCore
        return 40 * 1024 * 1024
    return 100 * 1024 * 1024             # v5e / v6e: 128 MiB


def gpt_focal_loss(logits, targets, *, alpha=ALPHA, gamma=GAMMA, row_tile=None):
    """logits: (N, C) float (f32 or bf16); targets: (N,) int class indices.

    Returns the scalar mean focal loss (float32), matching
    mean(alpha * (1 - exp(-ce))**gamma * ce) with ce = cross_entropy(logits, targets).
    """
    n, c = logits.shape
    vmem_limit = _vmem_limit_bytes()

    if row_tile is None:
        # Per-row VMEM footprint of one grid step:
        #   2 * C * in_bytes   double-buffered logits block (on-wire dtype)
        #   ~1 KiB             double-buffered (row,1) int32 targets ((8,128) padding)
        #   4 * C * 4 B        f32 intermediates (upcast, z, exp, iota/select temps)
        in_bytes = jnp.dtype(logits.dtype).itemsize
        per_row = 2 * c * in_bytes + 1024 + 16 * c
        budget = int(vmem_limit * 0.9)
        row_tile = budget // max(per_row, 1)
    row_tile = max(8, (row_tile // 8) * 8)
    row_tile = min(row_tile, 4096)                 # bound per-step latency
    row_tile = min(row_tile, _round_up(n, 8))      # never far past N

    num_tiles = pl.cdiv(n, row_tile)
    tgt2d = targets.astype(jnp.int32).reshape(n, 1)

    kernel = functools.partial(
        _focal_loss_kernel,
        n_rows=n,
        row_tile=row_tile,
        alpha=float(alpha),
        gamma=float(gamma),
    )

    partials = pl.pallas_call(
        kernel,
        out_shape=jax.ShapeDtypeStruct((num_tiles, 1, 1), jnp.float32),
        grid_spec=pltpu.PrefetchScalarGridSpec(
            num_scalar_prefetch=0,
            grid=(num_tiles,),
            in_specs=[
                pl.BlockSpec((row_tile, c), lambda i: (i, 0)),
                pl.BlockSpec((row_tile, 1), lambda i: (i, 0)),
            ],
            out_specs=pl.BlockSpec((1, 1, 1), lambda i: (i, 0, 0)),
        ),
        compiler_params=pltpu.CompilerParams(
            dimension_semantics=("parallel",),
            vmem_limit_bytes=vmem_limit,
        ),
    )(logits, tgt2d)

    # Final mean over num_tiles partial sums (tail tiles already masked to 0).
    return jnp.sum(partials) / jnp.float32(n)


if __name__ == "__main__":
    key = jax.random.PRNGKey(0)
    k_logits, k_tgt = jax.random.split(key)

    N, C = 16, 32  # small synthetic shapes: 16 samples, 32 classes
    logits = jax.random.normal(k_logits, (N, C), dtype=jnp.float32)
    targets = jax.random.randint(k_tgt, (N,), 0, C, dtype=jnp.int32)

    loss = jax.block_until_ready(gpt_focal_loss(logits, targets))

    # Pure-JAX reference (same math as F.cross_entropy + focal weighting).
    logp_ref = jax.nn.log_softmax(logits, axis=-1)
    ce_ref = -jnp.take_along_axis(logp_ref, targets[:, None], axis=-1)[:, 0]
    pt_ref = jnp.exp(-ce_ref)
    ref = jnp.mean(ALPHA * (1.0 - pt_ref) ** GAMMA * ce_ref)
    assert jnp.allclose(loss, ref, rtol=1e-5, atol=1e-6), (loss, ref)

    print("KERNEL_OK")
</pallas_src>

<mosaic_0001>
module attributes {stable_mosaic.version = 11 : i64} {
  func.func @_focal_loss_kernel(%arg0: i32, %arg1: memref<16x32xf32, #tpu.memory_space<vmem>>, %arg2: memref<16x1xi32, #tpu.memory_space<vmem>>, %arg3: memref<1x1x1xf32, #tpu.memory_space<vmem>>) attributes {dimension_semantics = [#tpu.dimension_semantics<parallel>], iteration_bounds = array<i64: 1>, scalar_prefetch = 0 : i64, scratch_operands = 0 : i64, tpu.core_type = #tpu.core_type<tc>, window_params = [{transform_indices = @transform_0, window_bounds = array<i64: 16, 32>}, {transform_indices = @transform_1, window_bounds = array<i64: 16, 1>}, {transform_indices = @transform_2, window_bounds = array<i64: 1, 1, 1>}]} {
    %c0 = arith.constant 0 : index
    %c0_0 = arith.constant 0 : index
    %0 = vector.load %arg1[%c0, %c0_0] : memref<16x32xf32, #tpu.memory_space<vmem>>, vector<16x32xf32>
    %c0_1 = arith.constant 0 : index
    %c0_2 = arith.constant 0 : index
    %1 = vector.load %arg2[%c0_1, %c0_2] : memref<16x1xi32, #tpu.memory_space<vmem>>, vector<16x1xi32>
    %cst = arith.constant dense<0xFF800000> : vector<16xf32>
    %2 = vector.multi_reduction <maximumf>, %0, %cst [1] : vector<16x32xf32> to vector<16xf32>
    %3 = vector.shape_cast %2 : vector<16xf32> to vector<16x1xf32>
    %4 = vector.broadcast %3 : vector<16x1xf32> to vector<16x32xf32>
    %5 = arith.subf %0, %4 : vector<16x32xf32>
    %6 = math.exp %5 : vector<16x32xf32>
    %cst_3 = arith.constant dense<0.000000e+00> : vector<16xf32>
    %7 = vector.multi_reduction <add>, %6, %cst_3 [1] : vector<16x32xf32> to vector<16xf32>
    %8 = vector.shape_cast %7 : vector<16xf32> to vector<16x1xf32>
    %9 = tpu.iota {dimensions = array<i32: 1>} : vector<16x32xi32>
    %10 = vector.broadcast %1 : vector<16x1xi32> to vector<16x32xi32>
    %11 = arith.cmpi eq, %9, %10 : vector<16x32xi32>
    %cst_4 = arith.constant 0.000000e+00 : f32
    %12 = vector.broadcast %cst_4 : f32 to vector<16x32xf32>
    %13 = arith.select %11, %5, %12 : vector<16x32xi1>, vector<16x32xf32>
    %cst_5 = arith.constant dense<0.000000e+00> : vector<16xf32>
    %14 = vector.multi_reduction <add>, %13, %cst_5 [1] : vector<16x32xf32> to vector<16xf32>
    %15 = vector.shape_cast %14 : vector<16xf32> to vector<16x1xf32>
    %16 = math.log %8 : vector<16x1xf32>
    %17 = arith.subf %16, %15 : vector<16x1xf32>
    %cst_6 = arith.constant 0.000000e+00 : f32
    %18 = vector.broadcast %cst_6 : f32 to vector<16x1xf32>
    %19 = arith.subf %18, %17 : vector<16x1xf32>
    %20 = math.exp %19 : vector<16x1xf32>
    %cst_7 = arith.constant 1.000000e+00 : f32
    %21 = vector.broadcast %cst_7 : f32 to vector<16x1xf32>
    %22 = arith.subf %21, %20 : vector<16x1xf32>
    %23 = arith.mulf %22, %22 : vector<16x1xf32>
    %cst_8 = arith.constant 5.000000e-01 : f32
    %24 = vector.broadcast %cst_8 : f32 to vector<16x1xf32>
    %25 = arith.mulf %24, %23 : vector<16x1xf32>
    %26 = arith.mulf %25, %17 : vector<16x1xf32>
    %c16_i32 = arith.constant 16 : i32
    %27 = arith.muli %arg0, %c16_i32 : i32
    %28 = tpu.iota {dimensions = array<i32: 0>} : vector<16x1xi32>
    %29 = vector.broadcast %27 : i32 to vector<16x1xi32>
    %30 = arith.addi %29, %28 : vector<16x1xi32>
    %c16_i32_9 = arith.constant 16 : i32
    %31 = vector.broadcast %c16_i32_9 : i32 to vector<16x1xi32>
    %32 = arith.cmpi slt, %30, %31 : vector<16x1xi32>
    %cst_10 = arith.constant 0.000000e+00 : f32
    %33 = vector.broadcast %cst_10 : f32 to vector<16x1xf32>
    %34 = arith.select %32, %26, %33 : vector<16x1xi1>, vector<16x1xf32>
    %cst_11 = arith.constant dense<0.000000e+00> : vector<1xf32>
    %35 = vector.multi_reduction <add>, %34, %cst_11 [0] : vector<16x1xf32> to vector<1xf32>
    %36 = vector.shape_cast %35 : vector<1xf32> to vector<1x1xf32>
    %37 = vector.shape_cast %36 : vector<1x1xf32> to vector<1x1x1xf32>
    %c0_12 = arith.constant 0 : index
    %c0_13 = arith.constant 0 : index
    %c0_14 = arith.constant 0 : index
    %38 = vector.load %arg3[%c0_12, %c0_13, %c0_14] : memref<1x1x1xf32, #tpu.memory_space<vmem>>, vector<1x1x1xf32>
    tpu.vector_store %arg3[%c0_12, %c0_13, %c0_14], %37 {strides = array<i32>} : memref<1x1x1xf32, #tpu.memory_space<vmem>>, vector<1x1x1xf32>,
    return
  }
  func.func @transform_0(%arg0: i32) -> (i32, i32) {
    %c0_i32 = arith.constant 0 : i32
    %c0_i32_0 = arith.constant 0 : i32
    return %arg0, %c0_i32 : i32, i32
  }
  func.func @transform_1(%arg0: i32) -> (i32, i32) {
    %c0_i32 = arith.constant 0 : i32
    %c0_i32_0 = arith.constant 0 : i32
    return %arg0, %c0_i32 : i32, i32
  }
  func.func @transform_2(%arg0: i32) -> (i32, i32, i32) {
    %c0_i32 = arith.constant 0 : i32
    %c0_i32_0 = arith.constant 0 : i32
    %c0_i32_1 = arith.constant 0 : i32
    return %arg0, %c0_i32, %c0_i32_0 : i32, i32, i32
  }
}

</mosaic_0001>

<llo_original>
// kernel: tpu_custom_call.1
$region0: #{tpu_custom_call.1}
  #allocation0 [shape = 'u32[]', space=smem, size = 0x4, offset = 0x4, fixed_abs, tag = 'smem constant byte address 0x4 - core index']
  #allocation1 [shape = 'u32[144,128]{1,0:T(1,128)}', space=vmem, size = 0x12000, scoped, tag = 'internal scratch']
  %s0 = inlined_call_operand.hbm [shape: f32[16,32], index: 0, kind: input, shape index: {}]
  %s1 = inlined_call_operand.hbm [shape: s32[16,1], index: 1, kind: input, shape index: {}]
  %s2 = inlined_call_operand.hbm [shape: f32[1,1,1], index: 2, kind: output, shape index: {}]
  %s3 = sld [smem:[#allocation0]]
  $region26: #{tpu_custom_call.1} parent=0
    _
  %s5 = ssub.s32 1, %s3
  %s6 = scalar_select 0, %s5, %s3
  $region1: #{tpu_custom_call.1} parent=0
    #allocation2 [shape = 'u8[8192]{0}', space=vmem, size = 0x2000, scoped, tag = 'input window, operand 0, single buffered']
    #allocation3 [shape = 's32[1]{0}', space=sflag, size = 0x4, scoped, tag = 'scoped memory for tpu_custom_call.1']
    #allocation4 [shape = 's32[1]{0}', space=sflag, size = 0x4, scoped, tag = 'scoped memory for tpu_custom_call.1']
    #allocation5 [shape = 'u8[8192]{0}', space=vmem, size = 0x2000, scoped, tag = 'input window, operand 1, single buffered']
    #allocation6 [shape = 's32[1]{0}', space=sflag, size = 0x4, scoped, tag = 'scoped memory for tpu_custom_call.1']
    #allocation7 [shape = 'u8[512]{0}', space=vmem, size = 0x400, scoped, tag = 'output window, operand 0, single buffered']
    %7 = vsyncpa [#allocation3], 0
    %8 = vsyncpa [#allocation6], 0
    %9 = vsyncpa [#allocation4], 0
    // Predicated region
    $region2: #{tpu_custom_call.1} parent=1 // pred_check
      _
    $region3: #{tpu_custom_call.1} parent=1 // pred_check_branch
      %11 = sbr.rel (0) target = $region5
    $region4: #{tpu_custom_call.1} parent=1 // pred_region
      %s13 = ssub.s32 256, 256
      %14 = vsyncadd [#allocation3], %s13
      %s15 = sshll.u32 [#allocation2], 4
      %s16 = int_to_ptr.vmem [resolvable:$true] %s15
      %21 = dma.hbm_to_vmem [thread:$0]  %s0, 256, %s16, [#allocation3], 128, 128, 8
    $region5: #{tpu_custom_call.1} parent=1 // pred_fallthru
      _
    // Predicated region
    $region6: #{tpu_custom_call.1} parent=1 // pred_check
      _
    $region7: #{tpu_custom_call.1} parent=1 // pred_check_branch
      %23 = sbr.rel (0) target = $region9
    $region8: #{tpu_custom_call.1} parent=1 // pred_region
      %s25 = ssub.s32 256, 256
      %26 = vsyncadd [#allocation6], %s25
      %s27 = sshll.u32 [#allocation5], 4
      %s28 = int_to_ptr.vmem [resolvable:$true] %s27
      %33 = dma.hbm_to_vmem [thread:$0]  %s1, 256, %s28, [#allocation6], 128, 128, 8
    $region9: #{tpu_custom_call.1} parent=1 // pred_fallthru
      _
    // Predicated region
    $region10: #{tpu_custom_call.1} parent=1 // pred_check
      _
    $region11: #{tpu_custom_call.1} parent=1 // pred_check_branch
      %35 = sbr.rel (0) target = $region13
    $region12: #{tpu_custom_call.1} parent=1 // pred_region
      %36 = dma.done [#allocation3], 256
    $region13: #{tpu_custom_call.1} parent=1 // pred_fallthru
      _
    // Predicated region
    $region14: #{tpu_custom_call.1} parent=1 // pred_check
      _
    $region15: #{tpu_custom_call.1} parent=1 // pred_check_branch
      %38 = sbr.rel (0) target = $region17
    $region16: #{tpu_custom_call.1} parent=1 // pred_region
      %39 = dma.done [#allocation6], 256
    $region17: #{tpu_custom_call.1} parent=1 // pred_fallthru
      _
    %v40 = vld [vmem:[#allocation2] sm:$0xff]
    %v41 = vld [vmem:[#allocation2 + $0x8] sm:$0xff]
    %v42 = vld [vmem:[#allocation5] sm:$0xff]
    %v43 = vld [vmem:[#allocation5 + $0x8] sm:$0xff]
    %vm44 = vcmask 261120
    %v45 = vsel %vm44, %v40, -inf
    %46 = vmax.xlane.f32.xlu0 %v45
    %v47 = vpop.xlane.xlu0 %46
    %v48 = vsel %vm44, %v41, -inf
    %49 = vmax.xlane.f32.xlu0 %v48
    %v50 = vpop.xlane.xlu0 %49
    %v51 = vsub.f32 %v40, %v47
    %v52 = vsub.f32 %v41, %v50
    %v53 = vmul.f32 %v51, 1.442695
    %v54 = vpow.pop %v53
    %v55 = vmul.f32 %v52, 1.442695
    %v56 = vpow.pop %v55
    %v57 = vsel %vm44, %v54, 0.0
    %58 = vadd.xlane.f32.xlu0 %v57
    %v59 = vpop.xlane.xlu0 %58
    %v60 = vsel %vm44, %v56, 0.0
    %61 = vadd.xlane.f32.xlu0 %v60
    %v62 = vpop.xlane.xlu0 %61
    %v63 = vlaneseq
    %v64 = vand.u32 %v63, 127
    %65 = vset.pattern.permute.xlu0 0
    %66 = vperm.xlu0 %65, %v42
    %v67 = vpop.permute.xlu0 %66
    %68 = vset.pattern.permute.xlu0 0
    %69 = vperm.xlu0 %68, %v43
    %v70 = vpop.permute.xlu0 %69
    %vm71 = vcmp.eq.s32.totalorder %v64, %v67
    %vm72 = vcmp.eq.s32.totalorder %v64, %v70
    %v73 = vsel %vm71, %v51, 0.0
    %v74 = vsel %vm72, %v52, 0.0
    %v75 = vsel %vm44, %v73, 0.0
    %76 = vadd.xlane.f32.xlu0 %v75
    %v77 = vpop.xlane.xlu0 %76
    %v78 = vsel %vm44, %v74, 0.0
    %79 = vadd.xlane.f32.xlu0 %v78
    %v80 = vpop.xlane.xlu0 %79
    %v81 = vlog2.pop %v59
    %v82 = vmul.f32 %v81, 0.6931472
    %v83 = vlog2.pop %v62
    %v84 = vmul.f32 %v83, 0.6931472
    %v85 = vsub.f32 %v82, %v77
    %v86 = vsub.f32 %v84, %v80
    %v87 = vsub.f32 0.0, %v85
    %v88 = vsub.f32 0.0, %v86
    %v89 = vmul.f32 %v87, 1.442695
    %v90 = vpow.pop %v89
    %v91 = vmul.f32 %v88, 1.442695
    %v92 = vpow.pop %v91
    %v93 = vsub.f32 1.0, %v90
    %v94 = vsub.f32 1.0, %v92
    %v95 = vmul.f32 %v93, %v93
    %v96 = vmul.f32 %v94, %v94
    %v97 = vmul.f32 %v95, 0.5
    %v98 = vmul.f32 %v96, 0.5
    %v99 = vmul.f32 %v97, %v85
    %v100 = vmul.f32 %v98, %v86
    %s101 = smul.u32 0, 16
    %v102 = vlaneseq
    %v103 = vshrl.u32 %v102, 7
    %v104 = vadd.s32 %v103, 8
    %v105 = vstv %s101
    %v106 = vadd.s32 %v105, %v103
    %v107 = vadd.s32 %v105, %v104
    %vm108 = vcmp.lt.s32.totalorder %v106, 16
    %vm109 = vcmp.lt.s32.totalorder %v107, 16
    %v110 = vsel %vm108, %v99, 0.0
    %v111 = vsel %vm109, %v100, 0.0
    %v112 = vadd.f32 %v110, %v111
    %v113 = vrot.slane %v112, 4
    %v114 = vadd.f32 %v112, %v113
    %v115 = vrot.slane %v114, 2
    %v116 = vadd.f32 %v114, %v115
    %v117 = vrot.slane %v116, 1
    %v118 = vadd.f32 %v116, %v117
    %vm119 = vcmask 0
    %120 = vst.msk [vmem:[#allocation7] sm:$0x1] %vm119, %v118
    // Predicated region
    $region18: #{tpu_custom_call.1} parent=1 // pred_check
      _
    $region19: #{tpu_custom_call.1} parent=1 // pred_check_branch
      %122 = sbr.rel (0) target = $region21
    $region20: #{tpu_custom_call.1} parent=1 // pred_region
      %s124 = ssub.s32 16, 16
      %125 = vsyncadd [#allocation4], %s124
      %s127 = sshll.u32 [#allocation7], 4
      %s128 = int_to_ptr.vmem [resolvable:$true] %s127
      %130 = dma.vmem_to_hbm [thread:$0]  %s128, 16, %s2, [#allocation4]
    $region21: #{tpu_custom_call.1} parent=1 // pred_fallthru
      _
    // Predicated region
    $region22: #{tpu_custom_call.1} parent=1 // pred_check
      _
    $region23: #{tpu_custom_call.1} parent=1 // pred_check_branch
      %132 = sbr.rel (0) target = $region25
    $region24: #{tpu_custom_call.1} parent=1 // pred_region
      %133 = dma.done [#allocation4], 16
    $region25: #{tpu_custom_call.1} parent=1 // pred_fallthru
      _
    %134 = vsyncpa [#allocation3], 1
    %135 = vsyncpa [#allocation6], 1
    %136 = vsyncpa [#allocation4], 1

</llo_original>
